<compile_context>
chip_gen: v7x
topology: tpu7x:2x2x1
jax: 0.10.0
libtpu: 0.0.40
codegen_flags: <defaults>
</compile_context>

<pallas_src>
import math

import jax
import jax.numpy as jnp
from jax.experimental import pallas as pl
from jax.experimental.pallas import tpu as pltpu


_DEFAULT_TILE_B = 2048  # rows per grid step; multiple of 8 (f32 sublanes)


def _round_up(n, m):
    return ((n + m - 1) // m) * m


def _mlp_kernel(x_ref, w1_ref, b1_ref, w2_ref, b2_ref, w3_ref, b3_ref, o_ref):
    # cast the streamed f32 tile to bf16 on the VPU (free, mem-bound kernel) and
    # run the MXU on its native bf16 path with f32 accumulation.
    x = x_ref[...].astype(jnp.bfloat16)
    # fc1 + bias + ReLU (bias/ReLU in f32 on the VPU)
    h1 = jnp.dot(x, w1_ref[...], preferred_element_type=jnp.float32)
    h1 = jnp.maximum(h1 + b1_ref[...], 0.0)
    # fc2 + bias + ReLU
    h2 = jnp.dot(h1.astype(jnp.bfloat16), w2_ref[...],
                 preferred_element_type=jnp.float32)
    h2 = jnp.maximum(h2 + b2_ref[...], 0.0)
    # fc3: single-output head -> elementwise multiply (VPU) + lane reduce (XLU);
    # avoids a nearly-empty 1-column MXU push/pop per tile.
    out = jnp.sum(h2 * w3_ref[...], axis=-1, keepdims=True) + b3_ref[...]
    o_ref[...] = out.astype(o_ref.dtype)


def regnn_forward(x, params, *, tile_b=_DEFAULT_TILE_B):
    """Fused forward pass of regNN_model.

    x: [B, inFeatures] float32
    params: dict with w1 [in,64], b1 [1,64], w2 [64,32], b2 [1,32], w3 [32,1], b3 [1,1]
    returns: [B, 1] float32
    """
    B, in_features = x.shape
    tile_b = min(tile_b, _round_up(B, 8))        # small batches: one (padded) tile
    grid = (pl.cdiv(B, tile_b),)

    # Weights are tiny and VMEM-resident for the whole grid; casting them once in
    # the wrapper is negligible. x deliberately stays f32 (see header note).
    w1 = params["w1"].astype(jnp.bfloat16)
    w2 = params["w2"].astype(jnp.bfloat16)
    b1 = params["b1"]
    b2 = params["b2"]
    w3_row = params["w3"].reshape(1, -1).astype(jnp.float32)  # (1, 32) row for VPU/XLU head
    b3 = params["b3"]

    def resident(a):
        # full array, same block on every grid step -> fetched once, stays VMEM-resident
        return pl.BlockSpec(a.shape, lambda i: (0,) * a.ndim)

    flops = 2 * B * (in_features * 64 + 64 * 32 + 32)
    bytes_accessed = (x.size * 4                       # f32 input
                      + w1.size * 2 + w2.size * 2      # bf16 weights (loaded once)
                      + (b1.size + b2.size + w3_row.size + b3.size) * 4
                      + B * 4)                         # f32 output column
    cost = pl.CostEstimate(flops=flops, transcendentals=0,
                           bytes_accessed=bytes_accessed)

    return pl.pallas_call(
        _mlp_kernel,
        out_shape=jax.ShapeDtypeStruct((B, 1), jnp.float32),
        grid_spec=pl.GridSpec(
            grid=grid,
            in_specs=[
                pl.BlockSpec((tile_b, in_features), lambda i: (i, 0)),  # stream x tiles
                resident(w1), resident(b1),
                resident(w2), resident(b2),
                resident(w3_row), resident(b3),
            ],
            out_specs=pl.BlockSpec((tile_b, 1), lambda i: (i, 0)),
        ),
        compiler_params=pltpu.CompilerParams(
            dimension_semantics=("parallel",),          # lets v7x use both TensorCores
            vmem_limit_bytes=48 * 1024 * 1024,          # headroom for the 2048-row tile
        ),
        cost_estimate=cost,
    )(x, w1, b1, w2, b2, w3_row, b3)


def _xavier_uniform(key, fan_in, fan_out):
    # torch.nn.init.xavier_uniform_ with gain=1
    bound = math.sqrt(6.0 / (fan_in + fan_out))
    # stored as [in, out] so the kernel multiplies x @ w directly
    return jax.random.uniform(key, (fan_in, fan_out), jnp.float32,
                              minval=-bound, maxval=bound)


def init_params(key, in_features=9):
    k1, k2, k3 = jax.random.split(key, 3)
    return {
        "w1": _xavier_uniform(k1, in_features, 64),
        "b1": jnp.zeros((1, 64), jnp.float32),
        "w2": _xavier_uniform(k2, 64, 32),
        "b2": jnp.zeros((1, 32), jnp.float32),
        "w3": _xavier_uniform(k3, 32, 1),
        "b3": jnp.zeros((1, 1), jnp.float32),
    }


def _reference_forward_matched(x, p):
    # Same precision recipe as the kernel (bf16 operands, f32 accumulate).
    h1 = jnp.dot(x.astype(jnp.bfloat16), p["w1"].astype(jnp.bfloat16),
                 preferred_element_type=jnp.float32) + p["b1"]
    h1 = jnp.maximum(h1, 0.0)
    h2 = jnp.dot(h1.astype(jnp.bfloat16), p["w2"].astype(jnp.bfloat16),
                 preferred_element_type=jnp.float32) + p["b2"]
    h2 = jnp.maximum(h2, 0.0)
    return jnp.sum(h2 * p["w3"].reshape(1, -1), axis=-1, keepdims=True) + p["b3"]


def _reference_forward_f32(x, p):
    h1 = jnp.maximum(x @ p["w1"] + p["b1"], 0.0)
    h2 = jnp.maximum(h1 @ p["w2"] + p["b2"], 0.0)
    return h2 @ p["w3"] + p["b3"]


if __name__ == "__main__":
    key = jax.random.PRNGKey(0)
    kx, kp, kx2 = jax.random.split(key, 3)

    B, IN_FEATURES = 8, 9
    params = init_params(kp, IN_FEATURES)

    # small batch (single exact tile)
    x = jax.random.normal(kx, (B, IN_FEATURES), jnp.float32)
    out = jax.block_until_ready(regnn_forward(x, params))
    ref = _reference_forward_matched(x, params)
    ref32 = _reference_forward_f32(x, params)
    assert out.shape == (B, 1)
    assert jnp.allclose(out, ref, atol=1e-3, rtol=1e-3), "mismatch vs matched-precision ref"
    assert jnp.allclose(out, ref32, atol=5e-2), "mismatch vs f32 reference"

    # batch that is not a multiple of the tile (exercises partial-tile padding path)
    B2 = 300
    x2 = jax.random.normal(kx2, (B2, IN_FEATURES), jnp.float32)
    out2 = jax.block_until_ready(regnn_forward(x2, params))
    ref2 = _reference_forward_matched(x2, params)
    assert out2.shape == (B2, 1)
    assert jnp.allclose(out2, ref2, atol=1e-3, rtol=1e-3), "mismatch on partial tile"

    print("KERNEL_OK")
</pallas_src>

<mosaic_0001>
module attributes {stable_mosaic.version = 11 : i64} {
  func.func @_mlp_kernel(%arg0: i32, %arg1: memref<8x9xf32, #tpu.memory_space<vmem>>, %arg2: memref<9x64xbf16, #tpu.memory_space<vmem>>, %arg3: memref<1x64xf32, #tpu.memory_space<vmem>>, %arg4: memref<64x32xbf16, #tpu.memory_space<vmem>>, %arg5: memref<1x32xf32, #tpu.memory_space<vmem>>, %arg6: memref<1x32xf32, #tpu.memory_space<vmem>>, %arg7: memref<1x1xf32, #tpu.memory_space<vmem>>, %arg8: memref<8x1xf32, #tpu.memory_space<vmem>>) attributes {dimension_semantics = [#tpu.dimension_semantics<parallel>], iteration_bounds = array<i64: 1>, scalar_prefetch = 0 : i64, scratch_operands = 0 : i64, tpu.core_type = #tpu.core_type<tc>, window_params = [{transform_indices = @transform_0, window_bounds = array<i64: 8, 9>}, {pipeline_mode = #tpu.pipeline_mode<synchronous>, transform_indices = @transform_1, window_bounds = array<i64: 9, 64>}, {pipeline_mode = #tpu.pipeline_mode<synchronous>, transform_indices = @transform_2, window_bounds = array<i64: 1, 64>}, {pipeline_mode = #tpu.pipeline_mode<synchronous>, transform_indices = @transform_3, window_bounds = array<i64: 64, 32>}, {pipeline_mode = #tpu.pipeline_mode<synchronous>, transform_indices = @transform_4, window_bounds = array<i64: 1, 32>}, {pipeline_mode = #tpu.pipeline_mode<synchronous>, transform_indices = @transform_5, window_bounds = array<i64: 1, 32>}, {pipeline_mode = #tpu.pipeline_mode<synchronous>, transform_indices = @transform_6, window_bounds = array<i64: 1, 1>}, {transform_indices = @transform_7, window_bounds = array<i64: 8, 1>}]} {
    %c0 = arith.constant 0 : index
    %c0_0 = arith.constant 0 : index
    %0 = vector.load %arg1[%c0, %c0_0] : memref<8x9xf32, #tpu.memory_space<vmem>>, vector<8x9xf32>
    %1 = arith.truncf %0 : vector<8x9xf32> to vector<8x9xbf16>
    %c0_1 = arith.constant 0 : index
    %c0_2 = arith.constant 0 : index
    %2 = vector.load %arg2[%c0_1, %c0_2] : memref<9x64xbf16, #tpu.memory_space<vmem>>, vector<9x64xbf16>
    %cst = arith.constant dense<0.000000e+00> : vector<8x64xf32>
    %3 = tpu.matmul %1, %2, %cst {dimension_numbers = #tpu.dot_dimension_numbers<[1], [0], [0], [1], [0, 0, 1, 1], [], []>} : vector<8x9xbf16>, vector<9x64xbf16>, vector<8x64xf32> -> vector<8x64xf32>
    %c0_3 = arith.constant 0 : index
    %c0_4 = arith.constant 0 : index
    %4 = vector.load %arg3[%c0_3, %c0_4] : memref<1x64xf32, #tpu.memory_space<vmem>>, vector<1x64xf32>
    %5 = vector.broadcast %4 : vector<1x64xf32> to vector<8x64xf32>
    %6 = arith.addf %3, %5 : vector<8x64xf32>
    %cst_5 = arith.constant 0.000000e+00 : f32
    %7 = vector.broadcast %cst_5 : f32 to vector<8x64xf32>
    %8 = arith.maximumf %6, %7 : vector<8x64xf32>
    %9 = arith.truncf %8 : vector<8x64xf32> to vector<8x64xbf16>
    %c0_6 = arith.constant 0 : index
    %c0_7 = arith.constant 0 : index
    %10 = vector.load %arg4[%c0_6, %c0_7] : memref<64x32xbf16, #tpu.memory_space<vmem>>, vector<64x32xbf16>
    %cst_8 = arith.constant dense<0.000000e+00> : vector<8x32xf32>
    %11 = tpu.matmul %9, %10, %cst_8 {dimension_numbers = #tpu.dot_dimension_numbers<[1], [0], [0], [1], [0, 0, 1, 1], [], []>} : vector<8x64xbf16>, vector<64x32xbf16>, vector<8x32xf32> -> vector<8x32xf32>
    %c0_9 = arith.constant 0 : index
    %c0_10 = arith.constant 0 : index
    %12 = vector.load %arg5[%c0_9, %c0_10] : memref<1x32xf32, #tpu.memory_space<vmem>>, vector<1x32xf32>
    %13 = vector.broadcast %12 : vector<1x32xf32> to vector<8x32xf32>
    %14 = arith.addf %11, %13 : vector<8x32xf32>
    %cst_11 = arith.constant 0.000000e+00 : f32
    %15 = vector.broadcast %cst_11 : f32 to vector<8x32xf32>
    %16 = arith.maximumf %14, %15 : vector<8x32xf32>
    %c0_12 = arith.constant 0 : index
    %c0_13 = arith.constant 0 : index
    %17 = vector.load %arg6[%c0_12, %c0_13] : memref<1x32xf32, #tpu.memory_space<vmem>>, vector<1x32xf32>
    %18 = vector.broadcast %17 : vector<1x32xf32> to vector<8x32xf32>
    %19 = arith.mulf %16, %18 : vector<8x32xf32>
    %cst_14 = arith.constant dense<0.000000e+00> : vector<8xf32>
    %20 = vector.multi_reduction <add>, %19, %cst_14 [1] : vector<8x32xf32> to vector<8xf32>
    %21 = vector.shape_cast %20 : vector<8xf32> to vector<8x1xf32>
    %c0_15 = arith.constant 0 : index
    %c0_16 = arith.constant 0 : index
    %22 = vector.load %arg7[%c0_15, %c0_16] : memref<1x1xf32, #tpu.memory_space<vmem>>, vector<1x1xf32>
    %23 = vector.broadcast %22 : vector<1x1xf32> to vector<8x1xf32>
    %24 = arith.addf %21, %23 : vector<8x1xf32>
    %c0_17 = arith.constant 0 : index
    %c0_18 = arith.constant 0 : index
    %25 = vector.load %arg8[%c0_17, %c0_18] : memref<8x1xf32, #tpu.memory_space<vmem>>, vector<8x1xf32>
    tpu.vector_store %arg8[%c0_17, %c0_18], %24 {strides = array<i32>} : memref<8x1xf32, #tpu.memory_space<vmem>>, vector<8x1xf32>,
    return
  }
  func.func @transform_0(%arg0: i32) -> (i32, i32) {
    %c0_i32 = arith.constant 0 : i32
    %c0_i32_0 = arith.constant 0 : i32
    return %arg0, %c0_i32 : i32, i32
  }
  func.func @transform_1(%arg0: i32) -> (i32, i32) {
    %c0_i32 = arith.constant 0 : i32
    %c0_i32_0 = arith.constant 0 : i32
    %c0_i32_1 = arith.constant 0 : i32
    return %c0_i32, %c0_i32_0 : i32, i32
  }
  func.func @transform_2(%arg0: i32) -> (i32, i32) {
    %c0_i32 = arith.constant 0 : i32
    %c0_i32_0 = arith.constant 0 : i32
    %c0_i32_1 = arith.constant 0 : i32
    return %c0_i32, %c0_i32_0 : i32, i32
  }
  func.func @transform_3(%arg0: i32) -> (i32, i32) {
    %c0_i32 = arith.constant 0 : i32
    %c0_i32_0 = arith.constant 0 : i32
    %c0_i32_1 = arith.constant 0 : i32
    return %c0_i32, %c0_i32_0 : i32, i32
  }
  func.func @transform_4(%arg0: i32) -> (i32, i32) {
    %c0_i32 = arith.constant 0 : i32
    %c0_i32_0 = arith.constant 0 : i32
    %c0_i32_1 = arith.constant 0 : i32
    return %c0_i32, %c0_i32_0 : i32, i32
  }
  func.func @transform_5(%arg0: i32) -> (i32, i32) {
    %c0_i32 = arith.constant 0 : i32
    %c0_i32_0 = arith.constant 0 : i32
    %c0_i32_1 = arith.constant 0 : i32
    return %c0_i32, %c0_i32_0 : i32, i32
  }
  func.func @transform_6(%arg0: i32) -> (i32, i32) {
    %c0_i32 = arith.constant 0 : i32
    %c0_i32_0 = arith.constant 0 : i32
    %c0_i32_1 = arith.constant 0 : i32
    return %c0_i32, %c0_i32_0 : i32, i32
  }
  func.func @transform_7(%arg0: i32) -> (i32, i32) {
    %c0_i32 = arith.constant 0 : i32
    %c0_i32_0 = arith.constant 0 : i32
    return %arg0, %c0_i32 : i32, i32
  }
}

</mosaic_0001>

<llo_original>
// kernel: tpu_custom_call.1
$region0: #{tpu_custom_call.1}
  #allocation0 [shape = 'u32[]', space=smem, size = 0x4, offset = 0x4, fixed_abs, tag = 'smem constant byte address 0x4 - core index']
  #allocation1 [shape = 'u32[144,128]{1,0:T(1,128)}', space=vmem, size = 0x12000, scoped, tag = 'internal scratch']
  #allocation2 [shape = 'f32[1,1]{1,0:T(1,128)S(1)}', space=vmem, size = 0x200, scoped, tag = 'scoped memory for tpu_custom_call.1']
  %s0 = inlined_call_operand.vmem [shape: f32[8,9], index: 0, kind: input, shape index: {}]
  %s1 = inlined_call_operand.vmem [shape: bf16[9,64], index: 1, kind: input, shape index: {}]
  %s2 = inlined_call_operand.vmem [shape: f32[1,64], index: 2, kind: input, shape index: {}]
  %s3 = inlined_call_operand.vmem [shape: bf16[64,32], index: 3, kind: input, shape index: {}]
  %s4 = inlined_call_operand.vmem [shape: f32[1,32], index: 4, kind: input, shape index: {}]
  %s5 = inlined_call_operand.vmem [shape: f32[1,32], index: 5, kind: input, shape index: {}]
  %s6 = inlined_call_operand.<no memory space> [shape: f32[1,1], index: 6, kind: input, shape index: {}]
  %s7 = inlined_call_operand.vmem [shape: f32[8,1], index: 7, kind: output, shape index: {}]
  %s8 = sld [smem:[#allocation0]]
  $region38: #{tpu_custom_call.1} parent=0
    _
  %s10 = ssub.s32 1, %s8
  %s11 = scalar_select 0, %s10, %s8
  %v12 = vstv %s6
  %13 = vst [vmem:[#allocation2] sm:$0x1] %v12
  // Predicated region
  $region2: #{tpu_custom_call.1} parent=0 // pred_check
    _
  $region3: #{tpu_custom_call.1} parent=0 // pred_check_branch
    %15 = sbr.rel (0) target = $region5
  $region4: #{tpu_custom_call.1} parent=0 // pred_region
    _
  $region5: #{tpu_custom_call.1} parent=0 // pred_fallthru
    _
  // Predicated region
  $region6: #{tpu_custom_call.1} parent=0 // pred_check
    _
  $region7: #{tpu_custom_call.1} parent=0 // pred_check_branch
    %17 = sbr.rel (0) target = $region9
  $region8: #{tpu_custom_call.1} parent=0 // pred_region
    _
  $region9: #{tpu_custom_call.1} parent=0 // pred_fallthru
    _
  // Predicated region
  $region10: #{tpu_custom_call.1} parent=0 // pred_check
    _
  $region11: #{tpu_custom_call.1} parent=0 // pred_check_branch
    %19 = sbr.rel (0) target = $region13
  $region12: #{tpu_custom_call.1} parent=0 // pred_region
    _
  $region13: #{tpu_custom_call.1} parent=0 // pred_fallthru
    _
  // Predicated region
  $region14: #{tpu_custom_call.1} parent=0 // pred_check
    _
  $region15: #{tpu_custom_call.1} parent=0 // pred_check_branch
    %21 = sbr.rel (0) target = $region17
  $region16: #{tpu_custom_call.1} parent=0 // pred_region
    _
  $region17: #{tpu_custom_call.1} parent=0 // pred_fallthru
    _
  // Predicated region
  $region18: #{tpu_custom_call.1} parent=0 // pred_check
    _
  $region19: #{tpu_custom_call.1} parent=0 // pred_check_branch
    %23 = sbr.rel (0) target = $region21
  $region20: #{tpu_custom_call.1} parent=0 // pred_region
    _
  $region21: #{tpu_custom_call.1} parent=0 // pred_fallthru
    _
  // Predicated region
  $region22: #{tpu_custom_call.1} parent=0 // pred_check
    _
  $region23: #{tpu_custom_call.1} parent=0 // pred_check_branch
    %25 = sbr.rel (0) target = $region25
  $region24: #{tpu_custom_call.1} parent=0 // pred_region
    _
  $region25: #{tpu_custom_call.1} parent=0 // pred_fallthru
    _
  // Predicated region
  $region26: #{tpu_custom_call.1} parent=0 // pred_check
    _
  $region27: #{tpu_custom_call.1} parent=0 // pred_check_branch
    %27 = sbr.rel (0) target = $region29
  $region28: #{tpu_custom_call.1} parent=0 // pred_region
    _
  $region29: #{tpu_custom_call.1} parent=0 // pred_fallthru
    _
  %v29 = vld [vmem:[%s0] sm:$0xff]
  %v30 = vpack.c.bf16 %v29, %v29
  %v31 = vld [vmem:[%s1] sm:$0xf]
  %v32 = vld [vmem:[%s1 + $0x4] sm:$0x1]
  %v33 = vld [vmem:[%s2] sm:$0x1]
  %v35 = vlaneseq
  %v36 = vshrl.u32 %v35, 7
  %v37 = vsub.s32 0, %v36
  %v38 = vrot.slane %v33, %v37
  %v42 = vunpack.c.l.b16 %v31
  %v43 = vunpack.c.l.b16 %v32
  %v44 = vpack.c.b16 %v43, %v42
  %vm45 = vcmask 72704
  %v47 = vsel %vm45, %v30, 0
  %vm49 = vcmask 1043456
  %vm50 = vcmask 1044480
  %v51 = vsel %vm49, 4294967295, 65535
  %v52 = vsel %vm50, %v51, 0
  %v54 = vand.u32 %v44, %v52
  %56 = vmatprep.subr.bf16.mxu0 0
  %57 = vmatpush1.bf16.msra.mxu0 %v54
  %58 = vmatprep.subr.bf16.mxu0 0
  %59 = vmatpush1.bf16.msra.mxu0 0
  %60 = vmatprep.subr.bf16.mxu0 0
  %61 = vmatpush1.bf16.msra.mxu0 0
  %62 = vmatprep.subr.bf16.mxu0 0
  %63 = vmatpush1.bf16.msra.mxu0 0
  %64 = vmatprep.subr.bf16.mxu0 0
  %65 = vmatpush1.bf16.msra.mxu0 0
  %66 = vmatprep.subr.bf16.mxu0 0
  %67 = vmatpush1.bf16.msra.mxu0 0
  %68 = vmatprep.subr.bf16.mxu0 0
  %69 = vmatpush1.bf16.msra.mxu0 0
  %70 = vmatprep.subr.bf16.mxu0 0
  %71 = vmatpush1.bf16.msra.mxu0 0
  %72 = vmatprep.subr.bf16.mxu0 0
  %73 = vmatpush1.bf16.msra.mxu0 0
  %74 = vmatprep.subr.bf16.mxu0 0
  %75 = vmatpush1.bf16.msra.mxu0 0
  %76 = vmatprep.subr.bf16.mxu0 0
  %77 = vmatpush1.bf16.msra.mxu0 0
  %78 = vmatprep.subr.bf16.mxu0 0
  %79 = vmatpush1.bf16.msra.mxu0 0
  %80 = vmatprep.subr.bf16.mxu0 0
  %81 = vmatpush1.bf16.msra.mxu0 0
  %82 = vmatprep.subr.bf16.mxu0 0
  %83 = vmatpush1.bf16.msra.mxu0 0
  %84 = vmatprep.subr.bf16.mxu0 0
  %85 = vmatpush1.bf16.msra.mxu0 0
  %86 = vmatprep.subr.bf16.mxu0 0
  %87 = vmatpush1.bf16.msra.mxu0 0
  %88 = vmatprep.mubr.bf16.mxu0 0
  %89 = vmatmul.mubr.bf16.gmra.mrb[0].mxu0 %v47
  %v90 = vpop.f32.mrb[0].mxu0
  %v91 = vadd.f32 %v38, %v90
  %v92 = vpop.f32.mrb[0].mxu0
  %v93 = vpop.f32.mrb[0].mxu0
  %v94 = vpop.f32.mrb[0].mxu0
  %95 = vdwg.mxu0
  %v96 = vmax.f32 %v91, 0.0
  %v97 = vpack.c.bf16 %v96, %v96
  %v98 = vld [vmem:[%s3] sm:$0xf]
  %v99 = vld [vmem:[%s3 + $0x4] sm:$0xf]
  %v100 = vld [vmem:[%s3 + $0x8] sm:$0xf]
  %v101 = vld [vmem:[%s3 + $0xc] sm:$0xf]
  %v102 = vld [vmem:[%s3 + $0x10] sm:$0xf]
  %v103 = vld [vmem:[%s3 + $0x14] sm:$0xf]
  %v104 = vld [vmem:[%s3 + $0x18] sm:$0xf]
  %v105 = vld [vmem:[%s3 + $0x1c] sm:$0xf]
  %v106 = vld [vmem:[%s4] sm:$0x1]
  %v108 = vlaneseq
  %v109 = vshrl.u32 %v108, 7
  %v110 = vsub.s32 0, %v109
  %v111 = vrot.slane %v106, %v110
  %v121 = vunpack.c.l.b16 %v98
  %v122 = vunpack.c.l.b16 %v99
  %v123 = vunpack.c.l.b16 %v100
  %v124 = vunpack.c.l.b16 %v101
  %v125 = vunpack.c.l.b16 %v102
  %v126 = vunpack.c.l.b16 %v103
  %v127 = vunpack.c.l.b16 %v104
  %v128 = vunpack.c.l.b16 %v105
  %v129 = vpack.c.b16 %v122, %v121
  %v130 = vpack.c.b16 %v124, %v123
  %v131 = vpack.c.b16 %v126, %v125
  %v132 = vpack.c.b16 %v128, %v127
  %vm137 = vcmask 523264
  %v139 = vsel %vm137, %v97, 0
  %141 = vmatprep.subr.bf16.mxu0 0
  %142 = vmatpush1.bf16.msra.mxu0 %v129
  %143 = vmatprep.subr.bf16.mxu0 0
  %144 = vmatpush1.bf16.msra.mxu0 %v130
  %145 = vmatprep.subr.bf16.mxu0 0
  %146 = vmatpush1.bf16.msra.mxu0 %v131
  %147 = vmatprep.subr.bf16.mxu0 0
  %148 = vmatpush1.bf16.msra.mxu0 %v132
  %149 = vmatprep.subr.bf16.mxu0 0
  %150 = vmatpush1.bf16.msra.mxu0 0
  %151 = vmatprep.subr.bf16.mxu0 0
  %152 = vmatpush1.bf16.msra.mxu0 0
  %153 = vmatprep.subr.bf16.mxu0 0
  %154 = vmatpush1.bf16.msra.mxu0 0
  %155 = vmatprep.subr.bf16.mxu0 0
  %156 = vmatpush1.bf16.msra.mxu0 0
  %157 = vmatprep.subr.bf16.mxu0 0
  %158 = vmatpush1.bf16.msra.mxu0 0
  %159 = vmatprep.subr.bf16.mxu0 0
  %160 = vmatpush1.bf16.msra.mxu0 0
  %161 = vmatprep.subr.bf16.mxu0 0
  %162 = vmatpush1.bf16.msra.mxu0 0
  %163 = vmatprep.subr.bf16.mxu0 0
  %164 = vmatpush1.bf16.msra.mxu0 0
  %165 = vmatprep.subr.bf16.mxu0 0
  %166 = vmatpush1.bf16.msra.mxu0 0
  %167 = vmatprep.subr.bf16.mxu0 0
  %168 = vmatpush1.bf16.msra.mxu0 0
  %169 = vmatprep.subr.bf16.mxu0 0
  %170 = vmatpush1.bf16.msra.mxu0 0
  %171 = vmatprep.subr.bf16.mxu0 0
  %172 = vmatpush1.bf16.msra.mxu0 0
  %173 = vmatprep.mubr.bf16.mxu0 0
  %174 = vmatmul.mubr.bf16.gmra.mrb[0].mxu0 %v139
  %v175 = vpop.f32.mrb[0].mxu0
  %v176 = vadd.f32 %v111, %v175
  %v177 = vpop.f32.mrb[0].mxu0
  %v178 = vpop.f32.mrb[0].mxu0
  %v179 = vpop.f32.mrb[0].mxu0
  %180 = vdwg.mxu0
  %v181 = vmax.f32 %v176, 0.0
  %v182 = vld [vmem:[%s5] sm:$0x1]
  %v184 = vlaneseq
  %v185 = vshrl.u32 %v184, 7
  %v186 = vsub.s32 0, %v185
  %v187 = vrot.slane %v182, %v186
  %v189 = vmul.f32 %v181, %v187
  %vm190 = vcmask 261120
  %v191 = vsel %vm190, %v189, 0.0
  %192 = vadd.xlane.f32.xlu0 %v191
  %v193 = vpop.xlane.xlu0 %192
  %v194 = vld [vmem:[#allocation2] sm:$0x1]
  %v196 = vlaneseq
  %v197 = vshrl.u32 %v196, 7
  %v198 = vsub.s32 0, %v197
  %v199 = vrot.slane %v194, %v198
  %v201 = vadd.f32 %v193, %v199
  %vm202 = vcmask 7168
  %203 = vst.msk [vmem:[%s7] sm:$0xff] %vm202, %v201
  // Predicated region
  $region30: #{tpu_custom_call.1} parent=0 // pred_check
    _
  $region31: #{tpu_custom_call.1} parent=0 // pred_check_branch
    %205 = sbr.rel (0) target = $region33
  $region32: #{tpu_custom_call.1} parent=0 // pred_region
    _
  $region33: #{tpu_custom_call.1} parent=0 // pred_fallthru
    _
  // Predicated region
  $region34: #{tpu_custom_call.1} parent=0 // pred_check
    _
  $region35: #{tpu_custom_call.1} parent=0 // pred_check_branch
    %207 = sbr.rel (0) target = $region37
  $region36: #{tpu_custom_call.1} parent=0 // pred_region
    _
  $region37: #{tpu_custom_call.1} parent=0 // pred_fallthru
    _

</llo_original>
